<compile_context>
chip_gen: v6e
topology: v6e:2x2x1
jax: 0.10.0
libtpu: 0.0.40
codegen_flags: <defaults>
</compile_context>

<pallas_src>
import functools

import jax
import jax.numpy as jnp
from jax import lax
from jax.experimental import pallas as pl
from jax.experimental.pallas import tpu as pltpu

_LANES = 128  # TPU lane width; chunk size for the in-kernel sub-blocks.


def _round_up(a, m):
    return -(-a // m) * m


def _mf_block_kernel(idx_ref, u_t_ref, v_t_ref, o_ref, *, chunk):
    """One block of TB samples.

    idx_ref : (2, TB)  int32   row 0 = user ids, row 1 = item ids
    u_t_ref : (F, U)   table   user embeddings, transposed, VMEM-resident
    v_t_ref : (F, I)   table   item embeddings, transposed, VMEM-resident
    o_ref   : (1, TB)  f32     per-sample dot products (lane-dense)
    """
    n_users = u_t_ref.shape[1]
    n_items = v_t_ref.shape[1]
    tb = o_ref.shape[1]
    tbl_dtype = u_t_ref.dtype

    # Tables are resident; load once (hoisted out of the chunk loop).
    u_tab = u_t_ref[...]            # (F, U)
    v_tab = v_t_ref[...]            # (F, I)

    dot_kwargs = dict(preferred_element_type=jnp.float32)
    if tbl_dtype == jnp.float32:
        # Exact f32 gather needs multi-pass MXU precision; bf16 tables (the
        # recommended storage) are already exact in a single pass.
        dot_kwargs["precision"] = lax.Precision.HIGHEST

    n_chunks = tb // chunk
    for c in range(n_chunks):                      # static slices, ~48 live vregs/chunk
        sl = slice(c * chunk, (c + 1) * chunk)
        u_idx = idx_ref[0:1, sl]                   # (1, chunk) int32
        i_idx = idx_ref[1:2, sl]                   # (1, chunk) int32

        # One-hot "gather" matrices: row = table row id, column = sample.
        u_oh = jnp.where(
            lax.broadcasted_iota(jnp.int32, (n_users, chunk), 0) == u_idx,
            1.0, 0.0).astype(tbl_dtype)            # (U, chunk)
        i_oh = jnp.where(
            lax.broadcasted_iota(jnp.int32, (n_items, chunk), 0) == i_idx,
            1.0, 0.0).astype(tbl_dtype)            # (I, chunk)

        # Gathered embedding columns via the MXU: (F, chunk).
        u_cols = jnp.dot(u_tab, u_oh, **dot_kwargs)
        v_cols = jnp.dot(v_tab, i_oh, **dot_kwargs)

        # Per-sample dot product: reduce over the factor (sublane) axis,
        # result is directly lane-dense (1, chunk).
        o_ref[:, sl] = jnp.sum(u_cols * v_cols, axis=0, keepdims=True)


def mf_forward(x, user_emb, item_emb, *, block_b=512):
    """x: (B, 2) int; user_emb: (U, F); item_emb: (I, F)  ->  (B,) f32."""
    batch = x.shape[0]
    n_users, n_factors = user_emb.shape
    n_items, n_factors2 = item_emb.shape
    assert n_factors == n_factors2, "user/item factor dims must match"

    chunk = _LANES
    tb = min(_round_up(block_b, chunk), _round_up(max(batch, 1), chunk))
    tb = max(tb, chunk)
    b_pad = _round_up(max(batch, 1), tb)
    nb = b_pad // tb

    # (2, B_pad) int32 index array; padded tail points at row 0 (valid rows,
    # their outputs are discarded below).
    idx = jnp.zeros((2, b_pad), jnp.int32)
    idx = idx.at[0, :batch].set(x[:, 0].astype(jnp.int32))
    idx = idx.at[1, :batch].set(x[:, 1].astype(jnp.int32))

    # Transposed tables: factors on sublanes, rows on lanes, so the in-kernel
    # gather is a standard MXU matmul and the final reduce is lane-dense.
    # (Wrapper-side layout plumbing, not compute hoisting.)
    u_t = user_emb.T                # (F, U)
    v_t = item_emb.T                # (F, I)

    # VMEM budget (re-derived conservatively so it is valid on v7x's 64 MiB
    # as well as v5e/v6e's 128 MiB; also raises v5e's 16 MiB default).
    itemsize = jnp.dtype(user_emb.dtype).itemsize
    tbl_bytes = itemsize * _round_up(n_factors, 8) * (
        _round_up(n_users, _LANES) + _round_up(n_items, _LANES))
    scratch_bytes = 4 * chunk * (
        _round_up(n_users, 8) + _round_up(n_items, 8) + 4 * n_factors) + (2 << 20)
    io_bytes = 2 * (2 * tb * 4) + 2 * (tb * 4)
    need = 2 * tbl_bytes + scratch_bytes + io_bytes
    budget = 48 * 1024 * 1024
    if need > budget:
        # TODO(synk): implement the manual double-buffered DMA row-gather path
        # (pl.ANY tables + pltpu.make_async_copy) for tables that exceed VMEM.
        raise NotImplementedError(
            "embedding tables too large for the VMEM-resident path")
    vmem_limit = int(min(max(need, 16 * 1024 * 1024), budget))

    out = pl.pallas_call(
        functools.partial(_mf_block_kernel, chunk=chunk),
        out_shape=jax.ShapeDtypeStruct((1, b_pad), jnp.float32),
        grid_spec=pltpu.PrefetchScalarGridSpec(
            num_scalar_prefetch=0,
            grid=(nb,),
            in_specs=[
                pl.BlockSpec((2, tb), lambda i: (0, i)),                 # indices
                pl.BlockSpec((n_factors, n_users), lambda i: (0, 0)),    # resident user table
                pl.BlockSpec((n_factors, n_items), lambda i: (0, 0)),    # resident item table
            ],
            out_specs=pl.BlockSpec((1, tb), lambda i: (0, i)),
        ),
        compiler_params=pltpu.CompilerParams(
            dimension_semantics=("parallel",),
            vmem_limit_bytes=vmem_limit,
        ),
    )(idx, u_t, v_t)
    return out[0, :batch]


if __name__ == "__main__":
    key = jax.random.PRNGKey(0)
    k_u, k_i, k_xu, k_xi = jax.random.split(key, 4)

    # feature_dims = (num_users, num_items); n_factors matches the module default.
    num_users, num_items = 37, 53
    n_factors = 128
    batch = 200

    # nn.Embedding default init N(0, 1); tables stored bf16 per the perf review
    # (gather is exact; multiply/accumulate stay f32 inside the kernel).
    user_emb = jax.random.normal(k_u, (num_users, n_factors), jnp.float32).astype(jnp.bfloat16)
    item_emb = jax.random.normal(k_i, (num_items, n_factors), jnp.float32).astype(jnp.bfloat16)

    user_ids = jax.random.randint(k_xu, (batch,), 0, num_users, dtype=jnp.int32)
    item_ids = jax.random.randint(k_xi, (batch,), 0, num_items, dtype=jnp.int32)
    x = jnp.stack([user_ids, item_ids], axis=1)        # (B, 2)

    # pure-JAX reference
    ref = jnp.sum(user_emb[x[:, 0]].astype(jnp.float32)
                  * item_emb[x[:, 1]].astype(jnp.float32), axis=1)

    out = jax.block_until_ready(mf_forward(x, user_emb, item_emb))
    assert out.shape == (batch,)
    assert jnp.allclose(out, ref, rtol=1e-4, atol=1e-4), (out, ref)

    # Smaller batch block -> multi-step grid (exercises padded tail + parallel axis).
    out2 = jax.block_until_ready(mf_forward(x, user_emb, item_emb, block_b=128))
    assert jnp.allclose(out2, ref, rtol=1e-4, atol=1e-4), (out2, ref)

    print("KERNEL_OK")
</pallas_src>

<mosaic_0001>
module attributes {stable_mosaic.version = 11 : i64} {
  func.func @_mf_block_kernel(%arg0: i32, %arg1: memref<2x256xi32, #tpu.memory_space<vmem>>, %arg2: memref<128x37xbf16, #tpu.memory_space<vmem>>, %arg3: memref<128x53xbf16, #tpu.memory_space<vmem>>, %arg4: memref<1x256xf32, #tpu.memory_space<vmem>>) attributes {dimension_semantics = [#tpu.dimension_semantics<parallel>], iteration_bounds = array<i64: 1>, scalar_prefetch = 0 : i64, scratch_operands = 0 : i64, tpu.core_type = #tpu.core_type<tc>, window_params = [{transform_indices = @transform_0, window_bounds = array<i64: 2, 256>}, {pipeline_mode = #tpu.pipeline_mode<synchronous>, transform_indices = @transform_1, window_bounds = array<i64: 128, 37>}, {pipeline_mode = #tpu.pipeline_mode<synchronous>, transform_indices = @transform_2, window_bounds = array<i64: 128, 53>}, {transform_indices = @transform_3, window_bounds = array<i64: 1, 256>}]} {
    %c0 = arith.constant 0 : index
    %c0_0 = arith.constant 0 : index
    %0 = vector.load %arg2[%c0, %c0_0] : memref<128x37xbf16, #tpu.memory_space<vmem>>, vector<128x37xbf16>
    %c0_1 = arith.constant 0 : index
    %c0_2 = arith.constant 0 : index
    %1 = vector.load %arg3[%c0_1, %c0_2] : memref<128x53xbf16, #tpu.memory_space<vmem>>, vector<128x53xbf16>
    %c0_3 = arith.constant 0 : index
    %c0_4 = arith.constant 0 : index
    %2 = vector.load %arg1[%c0_3, %c0_4] : memref<2x256xi32, #tpu.memory_space<vmem>>, vector<1x128xi32>
    %c1 = arith.constant 1 : index
    %c0_5 = arith.constant 0 : index
    %3 = vector.load %arg1[%c1, %c0_5] : memref<2x256xi32, #tpu.memory_space<vmem>>, vector<1x128xi32>
    %4 = tpu.iota {dimensions = array<i32: 0>} : vector<37x128xi32>
    %5 = vector.broadcast %2 : vector<1x128xi32> to vector<37x128xi32>
    %6 = arith.cmpi eq, %4, %5 : vector<37x128xi32>
    %cst = arith.constant 1.000000e+00 : f32
    %cst_6 = arith.constant 0.000000e+00 : f32
    %7 = vector.broadcast %cst : f32 to vector<37x128xf32>
    %8 = vector.broadcast %cst_6 : f32 to vector<37x128xf32>
    %9 = arith.select %6, %7, %8 : vector<37x128xi1>, vector<37x128xf32>
    %10 = arith.truncf %9 : vector<37x128xf32> to vector<37x128xbf16>
    %11 = tpu.iota {dimensions = array<i32: 0>} : vector<53x128xi32>
    %12 = vector.broadcast %3 : vector<1x128xi32> to vector<53x128xi32>
    %13 = arith.cmpi eq, %11, %12 : vector<53x128xi32>
    %cst_7 = arith.constant 1.000000e+00 : f32
    %cst_8 = arith.constant 0.000000e+00 : f32
    %14 = vector.broadcast %cst_7 : f32 to vector<53x128xf32>
    %15 = vector.broadcast %cst_8 : f32 to vector<53x128xf32>
    %16 = arith.select %13, %14, %15 : vector<53x128xi1>, vector<53x128xf32>
    %17 = arith.truncf %16 : vector<53x128xf32> to vector<53x128xbf16>
    %cst_9 = arith.constant dense<0.000000e+00> : vector<128x128xf32>
    %18 = tpu.matmul %0, %10, %cst_9 {dimension_numbers = #tpu.dot_dimension_numbers<[1], [0], [0], [1], [0, 0, 1, 1], [], []>} : vector<128x37xbf16>, vector<37x128xbf16>, vector<128x128xf32> -> vector<128x128xf32>
    %cst_10 = arith.constant dense<0.000000e+00> : vector<128x128xf32>
    %19 = tpu.matmul %1, %17, %cst_10 {dimension_numbers = #tpu.dot_dimension_numbers<[1], [0], [0], [1], [0, 0, 1, 1], [], []>} : vector<128x53xbf16>, vector<53x128xbf16>, vector<128x128xf32> -> vector<128x128xf32>
    %20 = arith.mulf %18, %19 : vector<128x128xf32>
    %cst_11 = arith.constant dense<0.000000e+00> : vector<128xf32>
    %21 = vector.multi_reduction <add>, %20, %cst_11 [0] : vector<128x128xf32> to vector<128xf32>
    %22 = vector.shape_cast %21 : vector<128xf32> to vector<1x128xf32>
    %c0_12 = arith.constant 0 : index
    %c0_13 = arith.constant 0 : index
    %23 = vector.load %arg4[%c0_12, %c0_13] : memref<1x256xf32, #tpu.memory_space<vmem>>, vector<1x128xf32>
    tpu.vector_store %arg4[%c0_12, %c0_13], %22 {strides = array<i32>} : memref<1x256xf32, #tpu.memory_space<vmem>>, vector<1x128xf32>,
    %c0_14 = arith.constant 0 : index
    %c128 = arith.constant 128 : index
    %24 = vector.load %arg1[%c0_14, %c128] : memref<2x256xi32, #tpu.memory_space<vmem>>, vector<1x128xi32>
    %c1_15 = arith.constant 1 : index
    %c128_16 = arith.constant 128 : index
    %25 = vector.load %arg1[%c1_15, %c128_16] : memref<2x256xi32, #tpu.memory_space<vmem>>, vector<1x128xi32>
    %26 = tpu.iota {dimensions = array<i32: 0>} : vector<37x128xi32>
    %27 = vector.broadcast %24 : vector<1x128xi32> to vector<37x128xi32>
    %28 = arith.cmpi eq, %26, %27 : vector<37x128xi32>
    %cst_17 = arith.constant 1.000000e+00 : f32
    %cst_18 = arith.constant 0.000000e+00 : f32
    %29 = vector.broadcast %cst_17 : f32 to vector<37x128xf32>
    %30 = vector.broadcast %cst_18 : f32 to vector<37x128xf32>
    %31 = arith.select %28, %29, %30 : vector<37x128xi1>, vector<37x128xf32>
    %32 = arith.truncf %31 : vector<37x128xf32> to vector<37x128xbf16>
    %33 = tpu.iota {dimensions = array<i32: 0>} : vector<53x128xi32>
    %34 = vector.broadcast %25 : vector<1x128xi32> to vector<53x128xi32>
    %35 = arith.cmpi eq, %33, %34 : vector<53x128xi32>
    %cst_19 = arith.constant 1.000000e+00 : f32
    %cst_20 = arith.constant 0.000000e+00 : f32
    %36 = vector.broadcast %cst_19 : f32 to vector<53x128xf32>
    %37 = vector.broadcast %cst_20 : f32 to vector<53x128xf32>
    %38 = arith.select %35, %36, %37 : vector<53x128xi1>, vector<53x128xf32>
    %39 = arith.truncf %38 : vector<53x128xf32> to vector<53x128xbf16>
    %cst_21 = arith.constant dense<0.000000e+00> : vector<128x128xf32>
    %40 = tpu.matmul %0, %32, %cst_21 {dimension_numbers = #tpu.dot_dimension_numbers<[1], [0], [0], [1], [0, 0, 1, 1], [], []>} : vector<128x37xbf16>, vector<37x128xbf16>, vector<128x128xf32> -> vector<128x128xf32>
    %cst_22 = arith.constant dense<0.000000e+00> : vector<128x128xf32>
    %41 = tpu.matmul %1, %39, %cst_22 {dimension_numbers = #tpu.dot_dimension_numbers<[1], [0], [0], [1], [0, 0, 1, 1], [], []>} : vector<128x53xbf16>, vector<53x128xbf16>, vector<128x128xf32> -> vector<128x128xf32>
    %42 = arith.mulf %40, %41 : vector<128x128xf32>
    %cst_23 = arith.constant dense<0.000000e+00> : vector<128xf32>
    %43 = vector.multi_reduction <add>, %42, %cst_23 [0] : vector<128x128xf32> to vector<128xf32>
    %44 = vector.shape_cast %43 : vector<128xf32> to vector<1x128xf32>
    %c0_24 = arith.constant 0 : index
    %c128_25 = arith.constant 128 : index
    %45 = vector.load %arg4[%c0_24, %c128_25] : memref<1x256xf32, #tpu.memory_space<vmem>>, vector<1x128xf32>
    tpu.vector_store %arg4[%c0_24, %c128_25], %44 {strides = array<i32>} : memref<1x256xf32, #tpu.memory_space<vmem>>, vector<1x128xf32>,
    return
  }
  func.func @transform_0(%arg0: i32) -> (i32, i32) {
    %c0_i32 = arith.constant 0 : i32
    %c0_i32_0 = arith.constant 0 : i32
    return %c0_i32, %arg0 : i32, i32
  }
  func.func @transform_1(%arg0: i32) -> (i32, i32) {
    %c0_i32 = arith.constant 0 : i32
    %c0_i32_0 = arith.constant 0 : i32
    %c0_i32_1 = arith.constant 0 : i32
    return %c0_i32, %c0_i32_0 : i32, i32
  }
  func.func @transform_2(%arg0: i32) -> (i32, i32) {
    %c0_i32 = arith.constant 0 : i32
    %c0_i32_0 = arith.constant 0 : i32
    %c0_i32_1 = arith.constant 0 : i32
    return %c0_i32, %c0_i32_0 : i32, i32
  }
  func.func @transform_3(%arg0: i32) -> (i32, i32) {
    %c0_i32 = arith.constant 0 : i32
    %c0_i32_0 = arith.constant 0 : i32
    return %c0_i32, %arg0 : i32, i32
  }
}

</mosaic_0001>

<llo_original>
// kernel: tpu_custom_call.1
$region0: #{tpu_custom_call.1}
  #allocation0 [shape = 'u32[]', space=smem, size = 0x4, offset = 0x4, fixed_abs, tag = 'smem constant byte address 0x4 - core index']
  #allocation1 [shape = 'u32[144,128]{1,0:T(1,128)}', space=vmem, size = 0x12000, scoped, tag = 'internal scratch']
  %s0 = inlined_call_operand.vmem [shape: s32[2,256], index: 0, kind: input, shape index: {}]
  %s1 = inlined_call_operand.vmem [shape: bf16[128,37], index: 1, kind: input, shape index: {}]
  %s2 = inlined_call_operand.vmem [shape: bf16[128,53], index: 2, kind: input, shape index: {}]
  %s3 = inlined_call_operand.hbm [shape: f32[1,256], index: 3, kind: output, shape index: {}]
  %s4 = sld [smem:[#allocation0]]
  $region22: #{tpu_custom_call.1} parent=0
    _
  %s6 = ssub.s32 1, %s4
  %s7 = scalar_select 0, %s6, %s4
  $region1: #{tpu_custom_call.1} parent=0
    #allocation2 [shape = 'u8[1024]{0}', space=vmem, size = 0x400, scoped, tag = 'output window, operand 0, single buffered']
    #allocation3 [shape = 's32[1]{0}', space=sflag, size = 0x4, scoped, tag = 'scoped memory for tpu_custom_call.1']
    %8 = vsyncpa [#allocation3], 0
    // Predicated region
    $region2: #{tpu_custom_call.1} parent=1 // pred_check
      _
    $region3: #{tpu_custom_call.1} parent=1 // pred_check_branch
      %10 = sbr.rel (0) target = $region5
    $region4: #{tpu_custom_call.1} parent=1 // pred_region
      _
    $region5: #{tpu_custom_call.1} parent=1 // pred_fallthru
      _
    // Predicated region
    $region6: #{tpu_custom_call.1} parent=1 // pred_check
      _
    $region7: #{tpu_custom_call.1} parent=1 // pred_check_branch
      %12 = sbr.rel (0) target = $region9
    $region8: #{tpu_custom_call.1} parent=1 // pred_region
      _
    $region9: #{tpu_custom_call.1} parent=1 // pred_fallthru
      _
    // Predicated region
    $region10: #{tpu_custom_call.1} parent=1 // pred_check
      _
    $region11: #{tpu_custom_call.1} parent=1 // pred_check_branch
      %14 = sbr.rel (0) target = $region13
    $region12: #{tpu_custom_call.1} parent=1 // pred_region
      _
    $region13: #{tpu_custom_call.1} parent=1 // pred_fallthru
      _
    %v16 = vld [vmem:[%s1] sm:$0xf]
    %v17 = vld [vmem:[%s1 + $0x4] sm:$0xf]
    %v18 = vld [vmem:[%s1 + $0x8] sm:$0xf]
    %v19 = vld [vmem:[%s1 + $0xc] sm:$0xf]
    %v20 = vld [vmem:[%s1 + $0x10] sm:$0xf]
    %v21 = vld [vmem:[%s1 + $0x14] sm:$0xf]
    %v22 = vld [vmem:[%s1 + $0x18] sm:$0xf]
    %v23 = vld [vmem:[%s1 + $0x1c] sm:$0xf]
    %v24 = vld [vmem:[%s1 + $0x20] sm:$0xf]
    %v25 = vld [vmem:[%s1 + $0x24] sm:$0xf]
    %v26 = vld [vmem:[%s1 + $0x28] sm:$0xf]
    %v27 = vld [vmem:[%s1 + $0x2c] sm:$0xf]
    %v28 = vld [vmem:[%s1 + $0x30] sm:$0xf]
    %v29 = vld [vmem:[%s1 + $0x34] sm:$0xf]
    %v30 = vld [vmem:[%s1 + $0x38] sm:$0xf]
    %v31 = vld [vmem:[%s1 + $0x3c] sm:$0xf]
    %v32 = vld [vmem:[%s2] sm:$0xf]
    %v33 = vld [vmem:[%s2 + $0x4] sm:$0xf]
    %v34 = vld [vmem:[%s2 + $0x8] sm:$0xf]
    %v35 = vld [vmem:[%s2 + $0xc] sm:$0xf]
    %v36 = vld [vmem:[%s2 + $0x10] sm:$0xf]
    %v37 = vld [vmem:[%s2 + $0x14] sm:$0xf]
    %v38 = vld [vmem:[%s2 + $0x18] sm:$0xf]
    %v39 = vld [vmem:[%s2 + $0x1c] sm:$0xf]
    %v40 = vld [vmem:[%s2 + $0x20] sm:$0xf]
    %v41 = vld [vmem:[%s2 + $0x24] sm:$0xf]
    %v42 = vld [vmem:[%s2 + $0x28] sm:$0xf]
    %v43 = vld [vmem:[%s2 + $0x2c] sm:$0xf]
    %v44 = vld [vmem:[%s2 + $0x30] sm:$0xf]
    %v45 = vld [vmem:[%s2 + $0x34] sm:$0xf]
    %v46 = vld [vmem:[%s2 + $0x38] sm:$0xf]
    %v47 = vld [vmem:[%s2 + $0x3c] sm:$0xf]
    %v48 = vld [vmem:[%s0] sm:$0x1]
    %v49 = vld [vmem:[%s0 + $0x1] sm:$0x1]
    %v50 = vlaneseq
    %v51 = vshrl.u32 %v50, 7
    %v52 = vadd.s32 %v51, 8
    %v53 = vadd.s32 %v51, 16
    %v54 = vadd.s32 %v51, 24
    %v55 = vadd.s32 %v51, 32
    %v56 = vlaneseq
    %v57 = vshrl.u32 %v56, 7
    %v58 = vsub.s32 0, %v57
    %v59 = vrot.slane %v48, %v58
    %vm60 = vcmp.eq.s32.totalorder %v51, %v59
    %vm61 = vcmp.eq.s32.totalorder %v52, %v59
    %vm62 = vcmp.eq.s32.totalorder %v53, %v59
    %vm63 = vcmp.eq.s32.totalorder %v54, %v59
    %vm64 = vcmp.eq.s32.totalorder %v55, %v59
    %v65 = vsel %vm60, 1.0, 0.0
    %v66 = vsel %vm61, 1.0, 0.0
    %v67 = vsel %vm62, 1.0, 0.0
    %v68 = vsel %vm63, 1.0, 0.0
    %v69 = vsel %vm64, 1.0, 0.0
    %v70 = vpack.c.bf16 %v66, %v65
    %v71 = vpack.c.bf16 %v68, %v67
    %v72 = vpack.c.bf16 %v69, %v69
    %v73 = vadd.s32 %v51, 40
    %v74 = vadd.s32 %v51, 48
    %v75 = vlaneseq
    %v76 = vshrl.u32 %v75, 7
    %v77 = vsub.s32 0, %v76
    %v78 = vrot.slane %v49, %v77
    %vm79 = vcmp.eq.s32.totalorder %v51, %v78
    %vm80 = vcmp.eq.s32.totalorder %v52, %v78
    %vm81 = vcmp.eq.s32.totalorder %v53, %v78
    %vm82 = vcmp.eq.s32.totalorder %v54, %v78
    %vm83 = vcmp.eq.s32.totalorder %v55, %v78
    %vm84 = vcmp.eq.s32.totalorder %v73, %v78
    %vm85 = vcmp.eq.s32.totalorder %v74, %v78
    %v86 = vsel %vm79, 1.0, 0.0
    %v87 = vsel %vm80, 1.0, 0.0
    %v88 = vsel %vm81, 1.0, 0.0
    %v89 = vsel %vm82, 1.0, 0.0
    %v90 = vsel %vm83, 1.0, 0.0
    %v91 = vsel %vm84, 1.0, 0.0
    %v92 = vsel %vm85, 1.0, 0.0
    %v93 = vpack.c.bf16 %v87, %v86
    %v94 = vpack.c.bf16 %v89, %v88
    %v95 = vpack.c.bf16 %v91, %v90
    %v96 = vpack.c.bf16 %v92, %v92
    %v113 = vunpack.c.l.b16 %v16
    %v114 = vunpack.c.l.b16 %v17
    %v115 = vunpack.c.l.b16 %v18
    %v116 = vunpack.c.l.b16 %v19
    %v117 = vunpack.c.l.b16 %v20
    %v118 = vunpack.c.l.b16 %v21
    %v119 = vunpack.c.l.b16 %v22
    %v120 = vunpack.c.l.b16 %v23
    %v121 = vunpack.c.l.b16 %v24
    %v122 = vunpack.c.l.b16 %v25
    %v123 = vunpack.c.l.b16 %v26
    %v124 = vunpack.c.l.b16 %v27
    %v125 = vunpack.c.l.b16 %v28
    %v126 = vunpack.c.l.b16 %v29
    %v127 = vunpack.c.l.b16 %v30
    %v128 = vunpack.c.l.b16 %v31
    %v129 = vpack.c.b16 %v114, %v113
    %v130 = vpack.c.b16 %v116, %v115
    %v131 = vpack.c.b16 %v118, %v117
    %v132 = vpack.c.b16 %v120, %v119
    %v133 = vpack.c.b16 %v122, %v121
    %v134 = vpack.c.b16 %v124, %v123
    %v135 = vpack.c.b16 %v126, %v125
    %v136 = vpack.c.b16 %v128, %v127
    %vm137 = vcmask 302080
    %v139 = vsel %vm137, %v129, 0
    %v142 = vsel %vm137, %v130, 0
    %v145 = vsel %vm137, %v131, 0
    %v148 = vsel %vm137, %v132, 0
    %v151 = vsel %vm137, %v133, 0
    %v154 = vsel %vm137, %v134, 0
    %v157 = vsel %vm137, %v135, 0
    %v160 = vsel %vm137, %v136, 0
    %vm162 = vcmask 1041408
    %vm163 = vcmask 1042432
    %v164 = vsel %vm162, 4294967295, 65535
    %v165 = vsel %vm163, %v164, 0
    %v167 = vand.u32 %v72, %v165
    %169 = vmatprep.subr.bf16.mxu0 0
    %170 = vmatpush1.bf16.msra.mxu0 0
    %171 = vmatprep.subr.bf16.mxu0 0
    %172 = vmatpush1.bf16.msra.mxu0 0
    %173 = vmatprep.subr.bf16.mxu0 0
    %174 = vmatpush1.bf16.msra.mxu0 0
    %175 = vmatprep.subr.bf16.mxu0 0
    %176 = vmatpush1.bf16.msra.mxu0 0
    %177 = vmatprep.subr.bf16.mxu0 0
    %178 = vmatpush1.bf16.msra.mxu0 0
    %179 = vmatprep.subr.bf16.mxu0 0
    %180 = vmatpush1.bf16.msra.mxu0 %v167
    %181 = vmatprep.subr.bf16.mxu0 0
    %182 = vmatpush1.bf16.msra.mxu0 %v71
    %183 = vmatprep.subr.bf16.mxu0 0
    %184 = vmatpush1.bf16.msra.mxu0 %v70
    %185 = vmatprep.subr.bf16.mxu0 0
    %186 = vmatpush2.bf16.msra.mxu0 0
    %187 = vmatprep.subr.bf16.mxu0 0
    %188 = vmatpush2.bf16.msra.mxu0 0
    %189 = vmatprep.subr.bf16.mxu0 0
    %190 = vmatpush2.bf16.msra.mxu0 0
    %191 = vmatprep.subr.bf16.mxu0 0
    %192 = vmatpush2.bf16.msra.mxu0 0
    %193 = vmatprep.subr.bf16.mxu0 0
    %194 = vmatpush2.bf16.msra.mxu0 0
    %195 = vmatprep.subr.bf16.mxu0 0
    %196 = vmatpush2.bf16.msra.mxu0 0
    %197 = vmatprep.subr.bf16.mxu0 0
    %198 = vmatpush2.bf16.msra.mxu0 0
    %199 = vmatprep.subr.bf16.mxu0 0
    %200 = vmatpush2.bf16.msra.mxu0 0
    %201 = vmatprep.mubr.bf16.mxu0 0
    %202 = vmatmul.mubr.bf16.gmra.mxu0 %v139
    %v203 = vpop.f32.mrf.mxu0
    %v204 = vadd.f32 0.0, %v203
    %v205 = vpop.f32.mrf.mxu0
    %v206 = vpop.f32.mrf.mxu0
    %v207 = vadd.f32 0.0, %v206
    %v208 = vpop.f32.mrf.mxu0
    %209 = vmatprep.mubr.bf16.mxu0 0
    %210 = vmatmul.mubr.bf16.gmra.mxu0 %v142
    %v211 = vpop.f32.mrf.mxu0
    %v212 = vadd.f32 0.0, %v211
    %v213 = vpop.f32.mrf.mxu0
    %v214 = vpop.f32.mrf.mxu0
    %v215 = vadd.f32 0.0, %v214
    %v216 = vpop.f32.mrf.mxu0
    %217 = vmatprep.mubr.bf16.mxu0 0
    %218 = vmatmul.mubr.bf16.gmra.mxu0 %v145
    %v219 = vpop.f32.mrf.mxu0
    %v220 = vadd.f32 0.0, %v219
    %v221 = vpop.f32.mrf.mxu0
    %v222 = vpop.f32.mrf.mxu0
    %v223 = vadd.f32 0.0, %v222
    %v224 = vpop.f32.mrf.mxu0
    %225 = vmatprep.mubr.bf16.mxu0 0
    %226 = vmatmul.mubr.bf16.gmra.mxu0 %v148
    %v227 = vpop.f32.mrf.mxu0
    %v228 = vadd.f32 0.0, %v227
    %v229 = vpop.f32.mrf.mxu0
    %v230 = vpop.f32.mrf.mxu0
    %v231 = vadd.f32 0.0, %v230
    %v232 = vpop.f32.mrf.mxu0
    %233 = vmatprep.mubr.bf16.mxu0 0
    %234 = vmatmul.mubr.bf16.gmra.mxu0 %v151
    %v235 = vpop.f32.mrf.mxu0
    %v236 = vadd.f32 0.0, %v235
    %v237 = vpop.f32.mrf.mxu0
    %v238 = vpop.f32.mrf.mxu0
    %v239 = vadd.f32 0.0, %v238
    %v240 = vpop.f32.mrf.mxu0
    %241 = vmatprep.mubr.bf16.mxu0 0
    %242 = vmatmul.mubr.bf16.gmra.mxu0 %v154
    %v243 = vpop.f32.mrf.mxu0
    %v244 = vadd.f32 0.0, %v243
    %v245 = vpop.f32.mrf.mxu0
    %v246 = vpop.f32.mrf.mxu0
    %v247 = vadd.f32 0.0, %v246
    %v248 = vpop.f32.mrf.mxu0
    %249 = vmatprep.mubr.bf16.mxu0 0
    %250 = vmatmul.mubr.bf16.gmra.mxu0 %v157
    %v251 = vpop.f32.mrf.mxu0
    %v252 = vadd.f32 0.0, %v251
    %v253 = vpop.f32.mrf.mxu0
    %v254 = vpop.f32.mrf.mxu0
    %v255 = vadd.f32 0.0, %v254
    %v256 = vpop.f32.mrf.mxu0
    %257 = vmatprep.mubr.bf16.mxu0 0
    %258 = vmatmul.mubr.bf16.gmra.mxu0 %v160
    %v259 = vpop.f32.mrf.mxu0
    %v260 = vadd.f32 0.0, %v259
    %v261 = vpop.f32.mrf.mxu0
    %v262 = vpop.f32.mrf.mxu0
    %v263 = vadd.f32 0.0, %v262
    %v264 = vpop.f32.mrf.mxu0
    %265 = vdwg.mxu0
    %v282 = vunpack.c.l.b16 %v32
    %v283 = vunpack.c.l.b16 %v33
    %v284 = vunpack.c.l.b16 %v34
    %v285 = vunpack.c.l.b16 %v35
    %v286 = vunpack.c.l.b16 %v36
    %v287 = vunpack.c.l.b16 %v37
    %v288 = vunpack.c.l.b16 %v38
    %v289 = vunpack.c.l.b16 %v39
    %v290 = vunpack.c.l.b16 %v40
    %v291 = vunpack.c.l.b16 %v41
    %v292 = vunpack.c.l.b16 %v42
    %v293 = vunpack.c.l.b16 %v43
    %v294 = vunpack.c.l.b16 %v44
    %v295 = vunpack.c.l.b16 %v45
    %v296 = vunpack.c.l.b16 %v46
    %v297 = vunpack.c.l.b16 %v47
    %v298 = vpack.c.b16 %v283, %v282
    %v299 = vpack.c.b16 %v285, %v284
    %v300 = vpack.c.b16 %v287, %v286
    %v301 = vpack.c.b16 %v289, %v288
    %v302 = vpack.c.b16 %v291, %v290
    %v303 = vpack.c.b16 %v293, %v292
    %v304 = vpack.c.b16 %v295, %v294
    %v305 = vpack.c.b16 %v297, %v296
    %vm306 = vcmask 433152
    %v308 = vsel %vm306, %v298, 0
    %v311 = vsel %vm306, %v299, 0
    %v314 = vsel %vm306, %v300, 0
    %v317 = vsel %vm306, %v301, 0
    %v320 = vsel %vm306, %v302, 0
    %v323 = vsel %vm306, %v303, 0
    %v326 = vsel %vm306, %v304, 0
    %v329 = vsel %vm306, %v305, 0
    %v332 = vand.u32 %v96, %v165
    %334 = vmatprep.subr.bf16.mxu0 0
    %335 = vmatpush1.bf16.msra.mxu0 0
    %336 = vmatprep.subr.bf16.mxu0 0
    %337 = vmatpush1.bf16.msra.mxu0 0
    %338 = vmatprep.subr.bf16.mxu0 0
    %339 = vmatpush1.bf16.msra.mxu0 0
    %340 = vmatprep.subr.bf16.mxu0 0
    %341 = vmatpush1.bf16.msra.mxu0 0
    %342 = vmatprep.subr.bf16.mxu0 0
    %343 = vmatpush1.bf16.msra.mxu0 %v332
    %344 = vmatprep.subr.bf16.mxu0 0
    %345 = vmatpush1.bf16.msra.mxu0 %v95
    %346 = vmatprep.subr.bf16.mxu0 0
    %347 = vmatpush1.bf16.msra.mxu0 %v94
    %348 = vmatprep.subr.bf16.mxu0 0
    %349 = vmatpush1.bf16.msra.mxu0 %v93
    %350 = vmatprep.subr.bf16.mxu0 0
    %351 = vmatpush2.bf16.msra.mxu0 0
    %352 = vmatprep.subr.bf16.mxu0 0
    %353 = vmatpush2.bf16.msra.mxu0 0
    %354 = vmatprep.subr.bf16.mxu0 0
    %355 = vmatpush2.bf16.msra.mxu0 0
    %356 = vmatprep.subr.bf16.mxu0 0
    %357 = vmatpush2.bf16.msra.mxu0 0
    %358 = vmatprep.subr.bf16.mxu0 0
    %359 = vmatpush2.bf16.msra.mxu0 0
    %360 = vmatprep.subr.bf16.mxu0 0
    %361 = vmatpush2.bf16.msra.mxu0 0
    %362 = vmatprep.subr.bf16.mxu0 0
    %363 = vmatpush2.bf16.msra.mxu0 0
    %364 = vmatprep.subr.bf16.mxu0 0
    %365 = vmatpush2.bf16.msra.mxu0 0
    %366 = vmatprep.mubr.bf16.mxu0 0
    %367 = vmatmul.mubr.bf16.gmra.mxu0 %v308
    %v368 = vpop.f32.mrf.mxu0
    %v369 = vadd.f32 0.0, %v368
    %v370 = vpop.f32.mrf.mxu0
    %v371 = vpop.f32.mrf.mxu0
    %v372 = vadd.f32 0.0, %v371
    %v373 = vpop.f32.mrf.mxu0
    %374 = vmatprep.mubr.bf16.mxu0 0
    %375 = vmatmul.mubr.bf16.gmra.mxu0 %v311
    %v376 = vpop.f32.mrf.mxu0
    %v377 = vadd.f32 0.0, %v376
    %v378 = vpop.f32.mrf.mxu0
    %v379 = vpop.f32.mrf.mxu0
    %v380 = vadd.f32 0.0, %v379
    %v381 = vpop.f32.mrf.mxu0
    %382 = vmatprep.mubr.bf16.mxu0 0
    %383 = vmatmul.mubr.bf16.gmra.mxu0 %v314
    %v384 = vpop.f32.mrf.mxu0
    %v385 = vadd.f32 0.0, %v384
    %v386 = vpop.f32.mrf.mxu0
    %v387 = vpop.f32.mrf.mxu0
    %v388 = vadd.f32 0.0, %v387
    %v389 = vpop.f32.mrf.mxu0
    %390 = vmatprep.mubr.bf16.mxu0 0
    %391 = vmatmul.mubr.bf16.gmra.mxu0 %v317
    %v392 = vpop.f32.mrf.mxu0
    %v393 = vadd.f32 0.0, %v392
    %v394 = vpop.f32.mrf.mxu0
    %v395 = vpop.f32.mrf.mxu0
    %v396 = vadd.f32 0.0, %v395
    %v397 = vpop.f32.mrf.mxu0
    %398 = vmatprep.mubr.bf16.mxu0 0
    %399 = vmatmul.mubr.bf16.gmra.mxu0 %v320
    %v400 = vpop.f32.mrf.mxu0
    %v401 = vadd.f32 0.0, %v400
    %v402 = vpop.f32.mrf.mxu0
    %v403 = vpop.f32.mrf.mxu0
    %v404 = vadd.f32 0.0, %v403
    %v405 = vpop.f32.mrf.mxu0
    %406 = vmatprep.mubr.bf16.mxu0 0
    %407 = vmatmul.mubr.bf16.gmra.mxu0 %v323
    %v408 = vpop.f32.mrf.mxu0
    %v409 = vadd.f32 0.0, %v408
    %v410 = vpop.f32.mrf.mxu0
    %v411 = vpop.f32.mrf.mxu0
    %v412 = vadd.f32 0.0, %v411
    %v413 = vpop.f32.mrf.mxu0
    %414 = vmatprep.mubr.bf16.mxu0 0
    %415 = vmatmul.mubr.bf16.gmra.mxu0 %v326
    %v416 = vpop.f32.mrf.mxu0
    %v417 = vadd.f32 0.0, %v416
    %v418 = vpop.f32.mrf.mxu0
    %v419 = vpop.f32.mrf.mxu0
    %v420 = vadd.f32 0.0, %v419
    %v421 = vpop.f32.mrf.mxu0
    %422 = vmatprep.mubr.bf16.mxu0 0
    %423 = vmatmul.mubr.bf16.gmra.mxu0 %v329
    %v424 = vpop.f32.mrf.mxu0
    %v425 = vadd.f32 0.0, %v424
    %v426 = vpop.f32.mrf.mxu0
    %v427 = vpop.f32.mrf.mxu0
    %v428 = vadd.f32 0.0, %v427
    %v429 = vpop.f32.mrf.mxu0
    %430 = vdwg.mxu0
    %v431 = vmul.f32 %v204, %v369
    %v432 = vmul.f32 %v207, %v372
    %v433 = vmul.f32 %v212, %v377
    %v434 = vmul.f32 %v215, %v380
    %v435 = vmul.f32 %v220, %v385
    %v436 = vmul.f32 %v223, %v388
    %v437 = vmul.f32 %v228, %v393
    %v438 = vmul.f32 %v231, %v396
    %v439 = vmul.f32 %v236, %v401
    %v440 = vmul.f32 %v239, %v404
    %v441 = vmul.f32 %v244, %v409
    %v442 = vmul.f32 %v247, %v412
    %v443 = vmul.f32 %v252, %v417
    %v444 = vmul.f32 %v255, %v420
    %v445 = vmul.f32 %v260, %v425
    %v446 = vmul.f32 %v263, %v428
    %v447 = vadd.f32 %v431, %v432
    %v448 = vadd.f32 %v447, %v433
    %v449 = vadd.f32 %v448, %v434
    %v450 = vadd.f32 %v449, %v435
    %v451 = vadd.f32 %v450, %v436
    %v452 = vadd.f32 %v451, %v437
    %v453 = vadd.f32 %v452, %v438
    %v454 = vadd.f32 %v453, %v439
    %v455 = vadd.f32 %v454, %v440
    %v456 = vadd.f32 %v455, %v441
    %v457 = vadd.f32 %v456, %v442
    %v458 = vadd.f32 %v457, %v443
    %v459 = vadd.f32 %v458, %v444
    %v460 = vadd.f32 %v459, %v445
    %v461 = vadd.f32 %v460, %v446
    %v462 = vrot.slane %v461, 4
    %v463 = vadd.f32 %v461, %v462
    %v464 = vrot.slane %v463, 2
    %v465 = vadd.f32 %v463, %v464
    %v466 = vrot.slane %v465, 1
    %v467 = vadd.f32 %v465, %v466
    %v468 = vlaneseq
    %vm469 = vcmp.ge.s32.totalorder %v468, 0
    %vm470 = vcmp.lt.s32.totalorder %v468, 128
    %vm471 = vmand %vm469, %vm470
    %472 = vst.msk [vmem:[#allocation2] sm:$0x1] %vm471, %v467
    %v473 = vld [vmem:[%s0 + $0x2] sm:$0x1]
    %v474 = vld [vmem:[%s0 + $0x3] sm:$0x1]
    %v475 = vlaneseq
    %v476 = vshrl.u32 %v475, 7
    %v477 = vsub.s32 0, %v476
    %v478 = vrot.slane %v473, %v477
    %vm479 = vcmp.eq.s32.totalorder %v51, %v478
    %vm480 = vcmp.eq.s32.totalorder %v52, %v478
    %vm481 = vcmp.eq.s32.totalorder %v53, %v478
    %vm482 = vcmp.eq.s32.totalorder %v54, %v478
    %vm483 = vcmp.eq.s32.totalorder %v55, %v478
    %v484 = vsel %vm479, 1.0, 0.0
    %v485 = vsel %vm480, 1.0, 0.0
    %v486 = vsel %vm481, 1.0, 0.0
    %v487 = vsel %vm482, 1.0, 0.0
    %v488 = vsel %vm483, 1.0, 0.0
    %v489 = vpack.c.bf16 %v485, %v484
    %v490 = vpack.c.bf16 %v487, %v486
    %v491 = vpack.c.bf16 %v488, %v488
    %v492 = vlaneseq
    %v493 = vshrl.u32 %v492, 7
    %v494 = vsub.s32 0, %v493
    %v495 = vrot.slane %v474, %v494
    %vm496 = vcmp.eq.s32.totalorder %v51, %v495
    %vm497 = vcmp.eq.s32.totalorder %v52, %v495
    %vm498 = vcmp.eq.s32.totalorder %v53, %v495
    %vm499 = vcmp.eq.s32.totalorder %v54, %v495
    %vm500 = vcmp.eq.s32.totalorder %v55, %v495
    %vm501 = vcmp.eq.s32.totalorder %v73, %v495
    %vm502 = vcmp.eq.s32.totalorder %v74, %v495
    %v503 = vsel %vm496, 1.0, 0.0
    %v504 = vsel %vm497, 1.0, 0.0
    %v505 = vsel %vm498, 1.0, 0.0
    %v506 = vsel %vm499, 1.0, 0.0
    %v507 = vsel %vm500, 1.0, 0.0
    %v508 = vsel %vm501, 1.0, 0.0
    %v509 = vsel %vm502, 1.0, 0.0
    %v510 = vpack.c.bf16 %v504, %v503
    %v511 = vpack.c.bf16 %v506, %v505
    %v512 = vpack.c.bf16 %v508, %v507
    %v513 = vpack.c.bf16 %v509, %v509
    %v515 = vand.u32 %v491, %v165
    %517 = vmatprep.subr.bf16.mxu0 0
    %518 = vmatpush1.bf16.msra.mxu0 0
    %519 = vmatprep.subr.bf16.mxu0 0
    %520 = vmatpush1.bf16.msra.mxu0 0
    %521 = vmatprep.subr.bf16.mxu0 0
    %522 = vmatpush1.bf16.msra.mxu0 0
    %523 = vmatprep.subr.bf16.mxu0 0
    %524 = vmatpush1.bf16.msra.mxu0 0
    %525 = vmatprep.subr.bf16.mxu0 0
    %526 = vmatpush1.bf16.msra.mxu0 0
    %527 = vmatprep.subr.bf16.mxu0 0
    %528 = vmatpush1.bf16.msra.mxu0 %v515
    %529 = vmatprep.subr.bf16.mxu0 0
    %530 = vmatpush1.bf16.msra.mxu0 %v490
    %531 = vmatprep.subr.bf16.mxu0 0
    %532 = vmatpush1.bf16.msra.mxu0 %v489
    %533 = vmatprep.subr.bf16.mxu0 0
    %534 = vmatpush2.bf16.msra.mxu0 0
    %535 = vmatprep.subr.bf16.mxu0 0
    %536 = vmatpush2.bf16.msra.mxu0 0
    %537 = vmatprep.subr.bf16.mxu0 0
    %538 = vmatpush2.bf16.msra.mxu0 0
    %539 = vmatprep.subr.bf16.mxu0 0
    %540 = vmatpush2.bf16.msra.mxu0 0
    %541 = vmatprep.subr.bf16.mxu0 0
    %542 = vmatpush2.bf16.msra.mxu0 0
    %543 = vmatprep.subr.bf16.mxu0 0
    %544 = vmatpush2.bf16.msra.mxu0 0
    %545 = vmatprep.subr.bf16.mxu0 0
    %546 = vmatpush2.bf16.msra.mxu0 0
    %547 = vmatprep.subr.bf16.mxu0 0
    %548 = vmatpush2.bf16.msra.mxu0 0
    %549 = vmatprep.mubr.bf16.mxu0 0
    %550 = vmatmul.mubr.bf16.gmra.mxu0 %v139
    %v551 = vpop.f32.mrf.mxu0
    %v552 = vadd.f32 0.0, %v551
    %v553 = vpop.f32.mrf.mxu0
    %v554 = vpop.f32.mrf.mxu0
    %v555 = vadd.f32 0.0, %v554
    %v556 = vpop.f32.mrf.mxu0
    %557 = vmatprep.mubr.bf16.mxu0 0
    %558 = vmatmul.mubr.bf16.gmra.mxu0 %v142
    %v559 = vpop.f32.mrf.mxu0
    %v560 = vadd.f32 0.0, %v559
    %v561 = vpop.f32.mrf.mxu0
    %v562 = vpop.f32.mrf.mxu0
    %v563 = vadd.f32 0.0, %v562
    %v564 = vpop.f32.mrf.mxu0
    %565 = vmatprep.mubr.bf16.mxu0 0
    %566 = vmatmul.mubr.bf16.gmra.mxu0 %v145
    %v567 = vpop.f32.mrf.mxu0
    %v568 = vadd.f32 0.0, %v567
    %v569 = vpop.f32.mrf.mxu0
    %v570 = vpop.f32.mrf.mxu0
    %v571 = vadd.f32 0.0, %v570
    %v572 = vpop.f32.mrf.mxu0
    %573 = vmatprep.mubr.bf16.mxu0 0
    %574 = vmatmul.mubr.bf16.gmra.mxu0 %v148
    %v575 = vpop.f32.mrf.mxu0
    %v576 = vadd.f32 0.0, %v575
    %v577 = vpop.f32.mrf.mxu0
    %v578 = vpop.f32.mrf.mxu0
    %v579 = vadd.f32 0.0, %v578
    %v580 = vpop.f32.mrf.mxu0
    %581 = vmatprep.mubr.bf16.mxu0 0
    %582 = vmatmul.mubr.bf16.gmra.mxu0 %v151
    %v583 = vpop.f32.mrf.mxu0
    %v584 = vadd.f32 0.0, %v583
    %v585 = vpop.f32.mrf.mxu0
    %v586 = vpop.f32.mrf.mxu0
    %v587 = vadd.f32 0.0, %v586
    %v588 = vpop.f32.mrf.mxu0
    %589 = vmatprep.mubr.bf16.mxu0 0
    %590 = vmatmul.mubr.bf16.gmra.mxu0 %v154
    %v591 = vpop.f32.mrf.mxu0
    %v592 = vadd.f32 0.0, %v591
    %v593 = vpop.f32.mrf.mxu0
    %v594 = vpop.f32.mrf.mxu0
    %v595 = vadd.f32 0.0, %v594
    %v596 = vpop.f32.mrf.mxu0
    %597 = vmatprep.mubr.bf16.mxu0 0
    %598 = vmatmul.mubr.bf16.gmra.mxu0 %v157
    %v599 = vpop.f32.mrf.mxu0
    %v600 = vadd.f32 0.0, %v599
    %v601 = vpop.f32.mrf.mxu0
    %v602 = vpop.f32.mrf.mxu0
    %v603 = vadd.f32 0.0, %v602
    %v604 = vpop.f32.mrf.mxu0
    %605 = vmatprep.mubr.bf16.mxu0 0
    %606 = vmatmul.mubr.bf16.gmra.mxu0 %v160
    %v607 = vpop.f32.mrf.mxu0
    %v608 = vadd.f32 0.0, %v607
    %v609 = vpop.f32.mrf.mxu0
    %v610 = vpop.f32.mrf.mxu0
    %v611 = vadd.f32 0.0, %v610
    %v612 = vpop.f32.mrf.mxu0
    %613 = vdwg.mxu0
    %v615 = vand.u32 %v513, %v165
    %617 = vmatprep.subr.bf16.mxu0 0
    %618 = vmatpush1.bf16.msra.mxu0 0
    %619 = vmatprep.subr.bf16.mxu0 0
    %620 = vmatpush1.bf16.msra.mxu0 0
    %621 = vmatprep.subr.bf16.mxu0 0
    %622 = vmatpush1.bf16.msra.mxu0 0
    %623 = vmatprep.subr.bf16.mxu0 0
    %624 = vmatpush1.bf16.msra.mxu0 0
    %625 = vmatprep.subr.bf16.mxu0 0
    %626 = vmatpush1.bf16.msra.mxu0 %v615
    %627 = vmatprep.subr.bf16.mxu0 0
    %628 = vmatpush1.bf16.msra.mxu0 %v512
    %629 = vmatprep.subr.bf16.mxu0 0
    %630 = vmatpush1.bf16.msra.mxu0 %v511
    %631 = vmatprep.subr.bf16.mxu0 0
    %632 = vmatpush1.bf16.msra.mxu0 %v510
    %633 = vmatprep.subr.bf16.mxu0 0
    %634 = vmatpush2.bf16.msra.mxu0 0
    %635 = vmatprep.subr.bf16.mxu0 0
    %636 = vmatpush2.bf16.msra.mxu0 0
    %637 = vmatprep.subr.bf16.mxu0 0
    %638 = vmatpush2.bf16.msra.mxu0 0
    %639 = vmatprep.subr.bf16.mxu0 0
    %640 = vmatpush2.bf16.msra.mxu0 0
    %641 = vmatprep.subr.bf16.mxu0 0
    %642 = vmatpush2.bf16.msra.mxu0 0
    %643 = vmatprep.subr.bf16.mxu0 0
    %644 = vmatpush2.bf16.msra.mxu0 0
    %645 = vmatprep.subr.bf16.mxu0 0
    %646 = vmatpush2.bf16.msra.mxu0 0
    %647 = vmatprep.subr.bf16.mxu0 0
    %648 = vmatpush2.bf16.msra.mxu0 0
    %649 = vmatprep.mubr.bf16.mxu0 0
    %650 = vmatmul.mubr.bf16.gmra.mxu0 %v308
    %v651 = vpop.f32.mrf.mxu0
    %v652 = vadd.f32 0.0, %v651
    %v653 = vpop.f32.mrf.mxu0
    %v654 = vpop.f32.mrf.mxu0
    %v655 = vadd.f32 0.0, %v654
    %v656 = vpop.f32.mrf.mxu0
    %657 = vmatprep.mubr.bf16.mxu0 0
    %658 = vmatmul.mubr.bf16.gmra.mxu0 %v311
    %v659 = vpop.f32.mrf.mxu0
    %v660 = vadd.f32 0.0, %v659
    %v661 = vpop.f32.mrf.mxu0
    %v662 = vpop.f32.mrf.mxu0
    %v663 = vadd.f32 0.0, %v662
    %v664 = vpop.f32.mrf.mxu0
    %665 = vmatprep.mubr.bf16.mxu0 0
    %666 = vmatmul.mubr.bf16.gmra.mxu0 %v314
    %v667 = vpop.f32.mrf.mxu0
    %v668 = vadd.f32 0.0, %v667
    %v669 = vpop.f32.mrf.mxu0
    %v670 = vpop.f32.mrf.mxu0
    %v671 = vadd.f32 0.0, %v670
    %v672 = vpop.f32.mrf.mxu0
    %673 = vmatprep.mubr.bf16.mxu0 0
    %674 = vmatmul.mubr.bf16.gmra.mxu0 %v317
    %v675 = vpop.f32.mrf.mxu0
    %v676 = vadd.f32 0.0, %v675
    %v677 = vpop.f32.mrf.mxu0
    %v678 = vpop.f32.mrf.mxu0
    %v679 = vadd.f32 0.0, %v678
    %v680 = vpop.f32.mrf.mxu0
    %681 = vmatprep.mubr.bf16.mxu0 0
    %682 = vmatmul.mubr.bf16.gmra.mxu0 %v320
    %v683 = vpop.f32.mrf.mxu0
    %v684 = vadd.f32 0.0, %v683
    %v685 = vpop.f32.mrf.mxu0
    %v686 = vpop.f32.mrf.mxu0
    %v687 = vadd.f32 0.0, %v686
    %v688 = vpop.f32.mrf.mxu0
    %689 = vmatprep.mubr.bf16.mxu0 0
    %690 = vmatmul.mubr.bf16.gmra.mxu0 %v323
    %v691 = vpop.f32.mrf.mxu0
    %v692 = vadd.f32 0.0, %v691
    %v693 = vpop.f32.mrf.mxu0
    %v694 = vpop.f32.mrf.mxu0
    %v695 = vadd.f32 0.0, %v694
    %v696 = vpop.f32.mrf.mxu0
    %697 = vmatprep.mubr.bf16.mxu0 0
    %698 = vmatmul.mubr.bf16.gmra.mxu0 %v326
    %v699 = vpop.f32.mrf.mxu0
    %v700 = vadd.f32 0.0, %v699
    %v701 = vpop.f32.mrf.mxu0
    %v702 = vpop.f32.mrf.mxu0
    %v703 = vadd.f32 0.0, %v702
    %v704 = vpop.f32.mrf.mxu0
    %705 = vmatprep.mubr.bf16.mxu0 0
    %706 = vmatmul.mubr.bf16.gmra.mxu0 %v329
    %v707 = vpop.f32.mrf.mxu0
    %v708 = vadd.f32 0.0, %v707
    %v709 = vpop.f32.mrf.mxu0
    %v710 = vpop.f32.mrf.mxu0
    %v711 = vadd.f32 0.0, %v710
    %v712 = vpop.f32.mrf.mxu0
    %713 = vdwg.mxu0
    %v714 = vmul.f32 %v552, %v652
    %v715 = vmul.f32 %v555, %v655
    %v716 = vmul.f32 %v560, %v660
    %v717 = vmul.f32 %v563, %v663
    %v718 = vmul.f32 %v568, %v668
    %v719 = vmul.f32 %v571, %v671
    %v720 = vmul.f32 %v576, %v676
    %v721 = vmul.f32 %v579, %v679
    %v722 = vmul.f32 %v584, %v684
    %v723 = vmul.f32 %v587, %v687
    %v724 = vmul.f32 %v592, %v692
    %v725 = vmul.f32 %v595, %v695
    %v726 = vmul.f32 %v600, %v700
    %v727 = vmul.f32 %v603, %v703
    %v728 = vmul.f32 %v608, %v708
    %v729 = vmul.f32 %v611, %v711
    %v730 = vadd.f32 %v714, %v715
    %v731 = vadd.f32 %v730, %v716
    %v732 = vadd.f32 %v731, %v717
    %v733 = vadd.f32 %v732, %v718
    %v734 = vadd.f32 %v733, %v719
    %v735 = vadd.f32 %v734, %v720
    %v736 = vadd.f32 %v735, %v721
    %v737 = vadd.f32 %v736, %v722
    %v738 = vadd.f32 %v737, %v723
    %v739 = vadd.f32 %v738, %v724
    %v740 = vadd.f32 %v739, %v725
    %v741 = vadd.f32 %v740, %v726
    %v742 = vadd.f32 %v741, %v727
    %v743 = vadd.f32 %v742, %v728
    %v744 = vadd.f32 %v743, %v729
    %v745 = vrot.slane %v744, 4
    %v746 = vadd.f32 %v744, %v745
    %v747 = vrot.slane %v746, 2
    %v748 = vadd.f32 %v746, %v747
    %v749 = vrot.slane %v748, 1
    %v750 = vadd.f32 %v748, %v749
    %751 = vst.msk [vmem:[#allocation2 + $0x1] sm:$0x1] %vm471, %v750
    // Predicated region
    $region14: #{tpu_custom_call.1} parent=1 // pred_check
      _
    $region15: #{tpu_custom_call.1} parent=1 // pred_check_branch
      %753 = sbr.rel (0) target = $region17
    $region16: #{tpu_custom_call.1} parent=1 // pred_region
      %s755 = ssub.s32 32, 32
      %756 = vsyncadd [#allocation3], %s755
      %s758 = sshll.u32 [#allocation2], 4
      %s759 = int_to_ptr.vmem [resolvable:$true] %s758
      %761 = dma.vmem_to_hbm [thread:$0]  %s759, 32, %s3, [#allocation3]
    $region17: #{tpu_custom_call.1} parent=1 // pred_fallthru
      _
    // Predicated region
    $region18: #{tpu_custom_call.1} parent=1 // pred_check
      _
    $region19: #{tpu_custom_call.1} parent=1 // pred_check_branch
      %763 = sbr.rel (0) target = $region21
    $region20: #{tpu_custom_call.1} parent=1 // pred_region
      %764 = dma.done [#allocation3], 32
    $region21: #{tpu_custom_call.1} parent=1 // pred_fallthru
      _
    %765 = vsyncpa [#allocation3], 1

</llo_original>
